<compile_context>
chip_gen: v7x
topology: tpu7x:2x2x1
jax: 0.10.0
libtpu: 0.0.40
codegen_flags: <defaults>
</compile_context>

<pallas_src>
import functools

import jax
import jax.numpy as jnp
from jax import lax
from jax.experimental import pallas as pl
from jax.experimental.pallas import tpu as pltpu


_TM_CAP = 1024  # DMA efficiency plateaus ~512-1024 rows; keeps >=2 M tiles for big M (v7x megacore)


def _round_up(x, m):
    return (x + m - 1) // m * m


def _maybe_pad(a, pads):
    if all(lo == 0 and hi == 0 for lo, hi in pads):
        return a
    return jnp.pad(a, pads)


def _vmem_capacity_bytes():
    """Physical VMEM per TensorCore (128 MiB v5e/v6e, 64 MiB v7x); safe fallback."""
    try:
        info = pltpu.get_tpu_info()
        for name in ("vmem_capacity_bytes", "vmem_bytes"):
            cap = getattr(info, name, None)
            if cap:
                return int(cap)
    except Exception:
        pass
    return 64 << 20  # conservative: v7x per-TC VMEM


def _patch_embed_kernel(p_ref, w_ref, b_ref, o_ref):
    # p_ref: (tm, K) patch rows (compute dtype)
    # w_ref: (K, tn) projection weight (compute dtype) -- VMEM resident
    # b_ref: (1, tn) bias (f32)                        -- VMEM resident
    # o_ref: (tm, tn) output tile
    acc = jnp.dot(p_ref[...], w_ref[...], preferred_element_type=jnp.float32)
    o_ref[...] = (acc + b_ref[...]).astype(o_ref.dtype)


def _extract_patches(x, patch_size, stride, compute_dtype):
    """im2col: NCHW -> (B*num_patches, C*ph*pw); rows flattened in (C, ph, pw) order."""
    B, C, H, W = x.shape
    ph, pw = patch_size
    sh, sw = stride
    nh = (H - ph) // sh + 1
    nw = (W - pw) // sw + 1
    if (sh, sw) == (ph, pw) and H % ph == 0 and W % pw == 0:
        # Non-overlapping patches: one fused reshape/transpose copy, cast folded in.
        p = x.reshape(B, C, nh, ph, nw, pw).transpose(0, 2, 4, 1, 3, 5)
        p = p.astype(compute_dtype)                       # (B, nh, nw, C, ph, pw)
    else:
        # Overlapping / ragged patches: dilated-patches lowers to efficient strided
        # copies (no per-element gather). Output features are ordered (C, ph, pw).
        p = lax.conv_general_dilated_patches(
            x.astype(compute_dtype),
            filter_shape=(ph, pw),
            window_strides=(sh, sw),
            padding="VALID",
            dimension_numbers=("NCHW", "OIHW", "NHWC"),
        )                                                 # (B, nh, nw, C*ph*pw)
    return p.reshape(B * nh * nw, C * ph * pw), nh * nw


def _choose_tm(M, granule, max_tm):
    """Largest VMEM-fitting M tile, preferring exact divisors of M (no padding)."""
    max_tm = max(granule, (max_tm // granule) * granule)
    if M <= max_tm:
        return _round_up(M, granule)
    t = max_tm
    best = 0
    while t >= granule:
        if M % t == 0:
            best = t
            break
        t -= granule
    if best >= max_tm // 2:
        return best
    # No good divisor: take an MXU-friendly tile and pad M.
    return (max_tm // 256) * 256 if max_tm >= 256 else max_tm


@functools.partial(
    jax.jit,
    static_argnames=("patch_size", "stride", "compute_dtype", "out_dtype",
                     "tm_override", "weight_resident"),
)
def patch_embed_forward(x, weight, bias, *, patch_size, stride,
                        compute_dtype=jnp.bfloat16, out_dtype=None,
                        tm_override=None, weight_resident=None):
    """PatchEmbed.forward: Conv2d(patch, stride) -> flatten(2) -> transpose(1, 2).

    x:      (B, C, H, W)
    weight: (E, C, ph, pw)   PyTorch Conv2d layout
    bias:   (E,)
    returns (B, num_patches, E) in out_dtype (default: x.dtype)
    """
    B = x.shape[0]
    E = weight.shape[0]
    out_dtype = jnp.dtype(out_dtype if out_dtype is not None else x.dtype)
    compute_dtype = jnp.dtype(compute_dtype)
    in_sz = compute_dtype.itemsize
    out_sz = out_dtype.itemsize

    patches, num_patches = _extract_patches(x, patch_size, stride, compute_dtype)
    M, K = patches.shape

    # Conv as GEMM: (E, C, ph, pw) -> (K, E); patch rows are (C, ph, pw)-flattened.
    w_mat = weight.reshape(E, K).T.astype(compute_dtype)
    b_mat = bias.reshape(1, E).astype(jnp.float32)

    E_pad = _round_up(E, 128)                  # lane-dense output slab
    granule = 16 if in_sz < 4 else 8           # bf16 sublane packing

    # ---- generation-aware VMEM budget ------------------------------------
    cap = _vmem_capacity_bytes()
    budget = min(int(cap * 0.8), 100 << 20)

    w_vmem = 2 * K * E_pad * in_sz             # double-buffered resident weight
    bias_vmem = 2 * 8 * E_pad * 4
    if weight_resident is None:
        weight_resident = w_vmem <= budget // 2

    if weight_resident:
        tn = E_pad                             # full-E output block (unmasked vst)
    else:
        tn = 256 if (E_pad % 256 == 0 and 2 * K * 256 * in_sz <= budget // 2) else 128
        w_vmem = 2 * K * tn * in_sz
        bias_vmem = 2 * 8 * tn * 4

    per_row = 2 * (K * in_sz + tn * out_sz)    # double-buffered patches + out rows
    avail = budget - w_vmem - bias_vmem - (2 << 20)
    max_tm = max(granule, avail // per_row)
    if tm_override is not None:
        tm = max(granule, _round_up(int(tm_override), granule))
    else:
        tm = _choose_tm(M, granule, min(_TM_CAP, max_tm))

    M_pad = _round_up(M, tm)

    patches_p = _maybe_pad(patches, ((0, M_pad - M), (0, 0)))
    w_p = _maybe_pad(w_mat, ((0, 0), (0, E_pad - E)))
    b_p = _maybe_pad(b_mat, ((0, 0), (0, E_pad - E)))

    m_tiles = M_pad // tm
    e_tiles = E_pad // tn

    if weight_resident:
        grid = (m_tiles,)
        in_specs = [
            pl.BlockSpec((tm, K), lambda i: (i, 0)),       # patches: streamed over M
            pl.BlockSpec((K, E_pad), lambda i: (0, 0)),    # weight:  VMEM resident
            pl.BlockSpec((1, E_pad), lambda i: (0, 0)),    # bias:    VMEM resident
        ]
        out_specs = pl.BlockSpec((tm, E_pad), lambda i: (i, 0))
        semantics = ("parallel",)
        streamed_p = M_pad * K * in_sz
    else:
        # E on the outer axis, M innermost: the weight/bias tile stays resident
        # across the whole M sweep (Pallas skips DMAs whose block index is
        # unchanged); only the patches re-stream (e_tiles times).
        grid = (e_tiles, m_tiles)
        in_specs = [
            pl.BlockSpec((tm, K), lambda j, i: (i, 0)),
            pl.BlockSpec((K, tn), lambda j, i: (0, j)),
            pl.BlockSpec((1, tn), lambda j, i: (0, j)),
        ]
        out_specs = pl.BlockSpec((tm, tn), lambda j, i: (i, j))
        semantics = ("parallel", "parallel")
        streamed_p = e_tiles * M_pad * K * in_sz

    vmem_usage = (w_vmem + bias_vmem
                  + 2 * tm * K * in_sz          # double-buffered patches tile
                  + 2 * tm * tn * out_sz)       # double-buffered output tile
    vmem_limit = int(max(vmem_usage + (2 << 20),
                         min(vmem_usage + (4 << 20), budget),
                         16 << 20))

    cost = pl.CostEstimate(
        flops=2 * M_pad * K * E_pad,
        transcendentals=0,
        bytes_accessed=(streamed_p                 # patches (possibly re-streamed)
                        + K * E_pad * in_sz        # weight (streamed once)
                        + E_pad * 4                # bias
                        + M_pad * E_pad * out_sz), # output
    )

    out = pl.pallas_call(
        _patch_embed_kernel,
        out_shape=jax.ShapeDtypeStruct((M_pad, E_pad), out_dtype),
        grid=grid,
        in_specs=in_specs,
        out_specs=out_specs,
        compiler_params=pltpu.CompilerParams(
            dimension_semantics=semantics,
            vmem_limit_bytes=vmem_limit,
        ),
        cost_estimate=cost,
    )(patches_p, w_p, b_p)

    if M_pad != M or E_pad != E:
        out = out[:M, :E]
    return out.reshape(B, num_patches, E)


def _reference_forward(x, weight, bias, patch_size, stride):
    """Pure-JAX reference: conv2d (valid, strided) -> flatten(2) -> transpose(1, 2)."""
    y = lax.conv_general_dilated(
        x, weight,
        window_strides=stride,
        padding="VALID",
        dimension_numbers=("NCHW", "OIHW", "NCHW"),
    )
    y = y + bias.reshape(1, -1, 1, 1)
    B, E, Hp, Wp = y.shape
    return y.reshape(B, E, Hp * Wp).transpose(0, 2, 1)


if __name__ == "__main__":
    key = jax.random.PRNGKey(0)

    def make_inputs(B, C, H, W, E, ph, pw, k):
        kx, kw, kb = jax.random.split(k, 3)
        x = jax.random.normal(kx, (B, C, H, W), dtype=jnp.float32)
        w = jax.random.normal(kw, (E, C, ph, pw), dtype=jnp.float32) * 0.02
        b = jax.random.normal(kb, (E,), dtype=jnp.float32) * 0.02
        return x, w, b

    k1, k2 = jax.random.split(key)

    # 1) Module-consistent small case: non-overlapping patches, resident weight.
    B, C, H, W, E = 2, 4, 16, 16, 32
    ps, st = (8, 8), (8, 8)                       # num_patches = 2*2 = 4
    x, w, b = make_inputs(B, C, H, W, E, *ps, k1)
    ref = _reference_forward(x, w, b, ps, st)

    out_f32 = patch_embed_forward(x, w, b, patch_size=ps, stride=st,
                                  compute_dtype=jnp.float32)
    out_f32 = jax.block_until_ready(out_f32)
    assert out_f32.shape == (B, 4, E), out_f32.shape
    assert jnp.allclose(out_f32, ref, atol=1e-4, rtol=1e-4), float(
        jnp.max(jnp.abs(out_f32 - ref)))

    out_bf16 = patch_embed_forward(x, w, b, patch_size=ps, stride=st,
                                   compute_dtype=jnp.bfloat16,
                                   out_dtype=jnp.bfloat16)
    out_bf16 = jax.block_until_ready(out_bf16)
    assert out_bf16.dtype == jnp.bfloat16
    assert jnp.allclose(out_bf16.astype(jnp.float32), ref, atol=3e-2, rtol=3e-2), float(
        jnp.max(jnp.abs(out_bf16.astype(jnp.float32) - ref)))

    # 2) Overlapping strided patches + E padding + multi-tile M grid (tm_override).
    B, C, H, W, E = 2, 2, 16, 16, 40
    ps, st = (8, 8), (4, 4)                       # nh = nw = 3 -> num_patches = 9
    x, w, b = make_inputs(B, C, H, W, E, *ps, k2)
    ref = _reference_forward(x, w, b, ps, st)
    out = patch_embed_forward(x, w, b, patch_size=ps, stride=st,
                              compute_dtype=jnp.float32, tm_override=8)
    out = jax.block_until_ready(out)
    assert out.shape == (B, 9, E), out.shape
    assert jnp.allclose(out, ref, atol=1e-4, rtol=1e-4), float(
        jnp.max(jnp.abs(out - ref)))

    # 3) Explicitly exercise the non-resident-weight fallback (E outer, M inner).
    out2 = patch_embed_forward(x, w, b, patch_size=ps, stride=st,
                               compute_dtype=jnp.float32, tm_override=8,
                               weight_resident=False)
    out2 = jax.block_until_ready(out2)
    assert jnp.allclose(out2, ref, atol=1e-4, rtol=1e-4), float(
        jnp.max(jnp.abs(out2 - ref)))

    print("KERNEL_OK")
</pallas_src>

<mosaic_0001>
module attributes {stable_mosaic.version = 11 : i64} {
  func.func @_patch_embed_kernel(%arg0: i32, %arg1: memref<8x256xf32, #tpu.memory_space<vmem>>, %arg2: memref<256x128xf32, #tpu.memory_space<vmem>>, %arg3: memref<1x128xf32, #tpu.memory_space<vmem>>, %arg4: memref<8x128xf32, #tpu.memory_space<vmem>>) attributes {dimension_semantics = [#tpu.dimension_semantics<parallel>], iteration_bounds = array<i64: 1>, scalar_prefetch = 0 : i64, scratch_operands = 0 : i64, tpu.core_type = #tpu.core_type<tc>, window_params = [{transform_indices = @transform_0, window_bounds = array<i64: 8, 256>}, {pipeline_mode = #tpu.pipeline_mode<synchronous>, transform_indices = @transform_1, window_bounds = array<i64: 256, 128>}, {pipeline_mode = #tpu.pipeline_mode<synchronous>, transform_indices = @transform_2, window_bounds = array<i64: 1, 128>}, {transform_indices = @transform_3, window_bounds = array<i64: 8, 128>}]} {
    %c0 = arith.constant 0 : index
    %c0_0 = arith.constant 0 : index
    %0 = vector.load %arg1[%c0, %c0_0] : memref<8x256xf32, #tpu.memory_space<vmem>>, vector<8x256xf32>
    %c0_1 = arith.constant 0 : index
    %c0_2 = arith.constant 0 : index
    %1 = vector.load %arg2[%c0_1, %c0_2] : memref<256x128xf32, #tpu.memory_space<vmem>>, vector<256x128xf32>
    %cst = arith.constant dense<0.000000e+00> : vector<8x128xf32>
    %2 = tpu.matmul %0, %1, %cst {dimension_numbers = #tpu.dot_dimension_numbers<[1], [0], [0], [1], [0, 0, 1, 1], [], []>} : vector<8x256xf32>, vector<256x128xf32>, vector<8x128xf32> -> vector<8x128xf32>
    %c0_3 = arith.constant 0 : index
    %c0_4 = arith.constant 0 : index
    %3 = vector.load %arg3[%c0_3, %c0_4] : memref<1x128xf32, #tpu.memory_space<vmem>>, vector<1x128xf32>
    %4 = vector.broadcast %3 : vector<1x128xf32> to vector<8x128xf32>
    %5 = arith.addf %2, %4 : vector<8x128xf32>
    %c0_5 = arith.constant 0 : index
    %c0_6 = arith.constant 0 : index
    %6 = vector.load %arg4[%c0_5, %c0_6] : memref<8x128xf32, #tpu.memory_space<vmem>>, vector<8x128xf32>
    tpu.vector_store %arg4[%c0_5, %c0_6], %5 {strides = array<i32>} : memref<8x128xf32, #tpu.memory_space<vmem>>, vector<8x128xf32>,
    return
  }
  func.func @transform_0(%arg0: i32) -> (i32, i32) {
    %c0_i32 = arith.constant 0 : i32
    %c0_i32_0 = arith.constant 0 : i32
    return %arg0, %c0_i32 : i32, i32
  }
  func.func @transform_1(%arg0: i32) -> (i32, i32) {
    %c0_i32 = arith.constant 0 : i32
    %c0_i32_0 = arith.constant 0 : i32
    %c0_i32_1 = arith.constant 0 : i32
    return %c0_i32, %c0_i32_0 : i32, i32
  }
  func.func @transform_2(%arg0: i32) -> (i32, i32) {
    %c0_i32 = arith.constant 0 : i32
    %c0_i32_0 = arith.constant 0 : i32
    %c0_i32_1 = arith.constant 0 : i32
    return %c0_i32, %c0_i32_0 : i32, i32
  }
  func.func @transform_3(%arg0: i32) -> (i32, i32) {
    %c0_i32 = arith.constant 0 : i32
    %c0_i32_0 = arith.constant 0 : i32
    return %arg0, %c0_i32 : i32, i32
  }
}

</mosaic_0001>

<llo_original>
// kernel: patch_embed_forward.1
$region0: #{patch_embed_forward.1}
  #allocation0 [shape = 'u32[]', space=smem, size = 0x4, offset = 0x4, fixed_abs, tag = 'smem constant byte address 0x4 - core index']
  #allocation1 [shape = 'u32[144,128]{1,0:T(1,128)}', space=vmem, size = 0x12000, scoped, tag = 'internal scratch']
  %s0 = inlined_call_operand.vmem [shape: f32[8,256], index: 0, kind: input, shape index: {}]
  %s1 = inlined_call_operand.vmem [shape: f32[256,128], index: 1, kind: input, shape index: {}]
  %s2 = inlined_call_operand.vmem [shape: f32[1,128], index: 2, kind: input, shape index: {}]
  %s3 = inlined_call_operand.hbm [shape: f32[8,128], index: 3, kind: output, shape index: {}]
  %s4 = sld [smem:[#allocation0]]
  $region22: #{patch_embed_forward.1} parent=0
    _
  %s6 = ssub.s32 1, %s4
  %s7 = scalar_select 0, %s6, %s4
  $region1: #{patch_embed_forward.1} parent=0
    #allocation2 [shape = 'u8[4096]{0}', space=vmem, size = 0x1000, scoped, tag = 'output window, operand 0, single buffered']
    #allocation3 [shape = 's32[1]{0}', space=sflag, size = 0x4, scoped, tag = 'scoped memory for patch_embed_forward.1']
    %8 = vsyncpa [#allocation3], 0
    // Predicated region
    $region2: #{patch_embed_forward.1} parent=1 // pred_check
      _
    $region3: #{patch_embed_forward.1} parent=1 // pred_check_branch
      %10 = sbr.rel (0) target = $region5
    $region4: #{patch_embed_forward.1} parent=1 // pred_region
      _
    $region5: #{patch_embed_forward.1} parent=1 // pred_fallthru
      _
    // Predicated region
    $region6: #{patch_embed_forward.1} parent=1 // pred_check
      _
    $region7: #{patch_embed_forward.1} parent=1 // pred_check_branch
      %12 = sbr.rel (0) target = $region9
    $region8: #{patch_embed_forward.1} parent=1 // pred_region
      _
    $region9: #{patch_embed_forward.1} parent=1 // pred_fallthru
      _
    // Predicated region
    $region10: #{patch_embed_forward.1} parent=1 // pred_check
      _
    $region11: #{patch_embed_forward.1} parent=1 // pred_check_branch
      %14 = sbr.rel (0) target = $region13
    $region12: #{patch_embed_forward.1} parent=1 // pred_region
      _
    $region13: #{patch_embed_forward.1} parent=1 // pred_fallthru
      _
    %v15 = vld [vmem:[%s0] sm:$0xff]
    %v16 = vld [vmem:[%s0 + $0x8] sm:$0xff]
    %v17 = vld [vmem:[%s1] sm:$0xff]
    %v18 = vld [vmem:[%s1 + $0x8] sm:$0xff]
    %v19 = vld [vmem:[%s1 + $0x10] sm:$0xff]
    %v20 = vld [vmem:[%s1 + $0x18] sm:$0xff]
    %v21 = vld [vmem:[%s1 + $0x20] sm:$0xff]
    %v22 = vld [vmem:[%s1 + $0x28] sm:$0xff]
    %v23 = vld [vmem:[%s1 + $0x30] sm:$0xff]
    %v24 = vld [vmem:[%s1 + $0x38] sm:$0xff]
    %v25 = vld [vmem:[%s1 + $0x40] sm:$0xff]
    %v26 = vld [vmem:[%s1 + $0x48] sm:$0xff]
    %v27 = vld [vmem:[%s1 + $0x50] sm:$0xff]
    %v28 = vld [vmem:[%s1 + $0x58] sm:$0xff]
    %v29 = vld [vmem:[%s1 + $0x60] sm:$0xff]
    %v30 = vld [vmem:[%s1 + $0x68] sm:$0xff]
    %v31 = vld [vmem:[%s1 + $0x70] sm:$0xff]
    %v32 = vld [vmem:[%s1 + $0x78] sm:$0xff]
    %v33 = vld [vmem:[%s1 + $0x80] sm:$0xff]
    %v34 = vld [vmem:[%s1 + $0x88] sm:$0xff]
    %v35 = vld [vmem:[%s1 + $0x90] sm:$0xff]
    %v36 = vld [vmem:[%s1 + $0x98] sm:$0xff]
    %v37 = vld [vmem:[%s1 + $0xa0] sm:$0xff]
    %v38 = vld [vmem:[%s1 + $0xa8] sm:$0xff]
    %v39 = vld [vmem:[%s1 + $0xb0] sm:$0xff]
    %v40 = vld [vmem:[%s1 + $0xb8] sm:$0xff]
    %v41 = vld [vmem:[%s1 + $0xc0] sm:$0xff]
    %v42 = vld [vmem:[%s1 + $0xc8] sm:$0xff]
    %v43 = vld [vmem:[%s1 + $0xd0] sm:$0xff]
    %v44 = vld [vmem:[%s1 + $0xd8] sm:$0xff]
    %v45 = vld [vmem:[%s1 + $0xe0] sm:$0xff]
    %v46 = vld [vmem:[%s1 + $0xe8] sm:$0xff]
    %v47 = vld [vmem:[%s1 + $0xf0] sm:$0xff]
    %v48 = vld [vmem:[%s1 + $0xf8] sm:$0xff]
    %v49 = vld [vmem:[%s2] sm:$0x1]
    %v51 = vlaneseq
    %v52 = vshrl.u32 %v51, 7
    %v53 = vsub.s32 0, %v52
    %v54 = vrot.slane %v49, %v53
    %56 = vmatprep.subr.mxu0 0.0
    %57 = vmatpush1.msra.mxu0 %v17
    %58 = vmatprep.subr.mxu0 0.0
    %59 = vmatpush1.msra.mxu0 %v18
    %60 = vmatprep.subr.mxu0 0.0
    %61 = vmatpush1.msra.mxu0 %v19
    %62 = vmatprep.subr.mxu0 0.0
    %63 = vmatpush1.msra.mxu0 %v20
    %64 = vmatprep.subr.mxu0 0.0
    %65 = vmatpush1.msra.mxu0 %v21
    %66 = vmatprep.subr.mxu0 0.0
    %67 = vmatpush1.msra.mxu0 %v22
    %68 = vmatprep.subr.mxu0 0.0
    %69 = vmatpush1.msra.mxu0 %v23
    %70 = vmatprep.subr.mxu0 0.0
    %71 = vmatpush1.msra.mxu0 %v24
    %72 = vmatprep.subr.mxu0 0.0
    %73 = vmatpush1.msra.mxu0 %v25
    %74 = vmatprep.subr.mxu0 0.0
    %75 = vmatpush1.msra.mxu0 %v26
    %76 = vmatprep.subr.mxu0 0.0
    %77 = vmatpush1.msra.mxu0 %v27
    %78 = vmatprep.subr.mxu0 0.0
    %79 = vmatpush1.msra.mxu0 %v28
    %80 = vmatprep.subr.mxu0 0.0
    %81 = vmatpush1.msra.mxu0 %v29
    %82 = vmatprep.subr.mxu0 0.0
    %83 = vmatpush1.msra.mxu0 %v30
    %84 = vmatprep.subr.mxu0 0.0
    %85 = vmatpush1.msra.mxu0 %v31
    %86 = vmatprep.subr.mxu0 0.0
    %87 = vmatpush1.msra.mxu0 %v32
    %88 = vmatprep.subr.mxu0 0.0
    %89 = vmatpush1.msra.mxu0 %v33
    %90 = vmatprep.subr.mxu0 0.0
    %91 = vmatpush1.msra.mxu0 %v34
    %92 = vmatprep.subr.mxu0 0.0
    %93 = vmatpush1.msra.mxu0 %v35
    %94 = vmatprep.subr.mxu0 0.0
    %95 = vmatpush1.msra.mxu0 %v36
    %96 = vmatprep.subr.mxu0 0.0
    %97 = vmatpush1.msra.mxu0 %v37
    %98 = vmatprep.subr.mxu0 0.0
    %99 = vmatpush1.msra.mxu0 %v38
    %100 = vmatprep.subr.mxu0 0.0
    %101 = vmatpush1.msra.mxu0 %v39
    %102 = vmatprep.subr.mxu0 0.0
    %103 = vmatpush1.msra.mxu0 %v40
    %104 = vmatprep.subr.mxu0 0.0
    %105 = vmatpush1.msra.mxu0 %v41
    %106 = vmatprep.subr.mxu0 0.0
    %107 = vmatpush1.msra.mxu0 %v42
    %108 = vmatprep.subr.mxu0 0.0
    %109 = vmatpush1.msra.mxu0 %v43
    %110 = vmatprep.subr.mxu0 0.0
    %111 = vmatpush1.msra.mxu0 %v44
    %112 = vmatprep.subr.mxu0 0.0
    %113 = vmatpush1.msra.mxu0 %v45
    %114 = vmatprep.subr.mxu0 0.0
    %115 = vmatpush1.msra.mxu0 %v46
    %116 = vmatprep.subr.mxu0 0.0
    %117 = vmatpush1.msra.mxu0 %v47
    %118 = vmatprep.subr.mxu0 0.0
    %119 = vmatpush1.msra.mxu0 %v48
    %120 = vmatprep.mubr.f32.mxu0 %v16
    %121 = vmatmul.mubr.f32.gmra.mrb[0].mxu0 %v15
    %v122 = vpop.f32.mrb[0].mxu0
    %v123 = vadd.f32 %v54, %v122
    %v124 = vpop.f32.mrb[0].mxu0
    %125 = vdwg.mxu0
    %126 = vst [vmem:[#allocation2] sm:$0xff] %v123
    // Predicated region
    $region14: #{patch_embed_forward.1} parent=1 // pred_check
      _
    $region15: #{patch_embed_forward.1} parent=1 // pred_check_branch
      %128 = sbr.rel (0) target = $region17
    $region16: #{patch_embed_forward.1} parent=1 // pred_region
      %s130 = ssub.s32 128, 128
      %131 = vsyncadd [#allocation3], %s130
      %s133 = sshll.u32 [#allocation2], 4
      %s134 = int_to_ptr.vmem [resolvable:$true] %s133
      %136 = dma.vmem_to_hbm [thread:$0]  %s134, 128, %s3, [#allocation3]
    $region17: #{patch_embed_forward.1} parent=1 // pred_fallthru
      _
    // Predicated region
    $region18: #{patch_embed_forward.1} parent=1 // pred_check
      _
    $region19: #{patch_embed_forward.1} parent=1 // pred_check_branch
      %138 = sbr.rel (0) target = $region21
    $region20: #{patch_embed_forward.1} parent=1 // pred_region
      %139 = dma.done [#allocation3], 128
    $region21: #{patch_embed_forward.1} parent=1 // pred_fallthru
      _
    %140 = vsyncpa [#allocation3], 1

</llo_original>
